<compile_context>
chip_gen: v7x
topology: tpu7x:2x2x1
jax: 0.10.0
libtpu: 0.0.40
codegen_flags: <defaults>
</compile_context>

<pallas_src>
import functools

import jax
import jax.numpy as jnp
from jax.experimental import pallas as pl
from jax.experimental.pallas import tpu as pltpu

_PAIR_LANES = 256        # 128 samples per slab row, 2 interleaved logits each
_PAIRS_PER_ROW = 128
_ROW_ALIGN = 32          # int8 sublane tiling -> keep tile rows a multiple of 32
_NUM_CORES = 2           # leading "parallel" axis; v7x has 2 TensorCores/chip
_MAX_TILE_ROWS = 1024    # 1024x256 f32 = 1 MiB of logits per grid step


def _round_up(x, m):
    return ((x + m - 1) // m) * m


def _focal_loss_kernel(pred_ref, lab_ref, out_ref, acc_ref, *, alpha, gamma, scale):
    # pred_ref: (T, 256) f32 — lanes 2k / 2k+1 hold (p0, p1) of sample 128*row + k
    # lab_ref : (T, 256) int8 — lane 2k+1 holds the label, lane 2k holds -1
    # out_ref : (1, 8, 128) f32 — per-core partial sums (2/N scale already applied)
    # acc_ref : (8, 256) f32 — running accumulator (persists across the inner axis)
    i = pl.program_id(1)

    @pl.when(i == 0)
    def _():
        acc_ref[...] = jnp.zeros_like(acc_ref)

    x = pred_ref[...]
    # Pair-wise logit difference via a lane roll (XLU, free slot): at odd lanes
    # 2k+1 this is d = p1 - p0 of sample k; even lanes are garbage and get w=0
    # through the -1 label sentinel.
    d = x - pltpu.roll(x, shift=1, axis=1)

    lab = lab_ref[...].astype(jnp.int32)
    is_pos = lab >= 1            # label >= 1 -> positive branch
    is_neg = lab == 0            # label == 0 -> negative branch
    valid = lab >= 0             # -1 -> padding / garbage lane / ignored label

    # Merged-branch focal loss:
    #   u    = s * (p0 - p1)            (s = +1 for pos, -1 for neg)
    #   sp   = softplus(u)   = -log_prob(selected class)
    #   lsig = log_sigmoid(u) = log_prob(other class)   (detached factor's log)
    #   contrib = w * exp(gamma * lsig) * sp,   w in {1-alpha, alpha, 0}
    u = jnp.where(is_pos, -d, d)
    u = jnp.where(valid, u, 0.0)               # keep masked lanes finite
    t = jnp.exp(-jnp.abs(u))
    l1p = jnp.log(1.0 + t)                     # TODO(synk): jnp.log1p once its Mosaic lowering is confirmed
    sp = jnp.maximum(u, 0.0) + l1p
    lsig = jnp.minimum(u, 0.0) - l1p
    pt = jnp.exp(gamma * lsig)                 # (1 - p_t)^gamma, gamma folded into the exponent
    w = jnp.where(is_pos, jnp.float32(1.0 - alpha),
                  jnp.where(is_neg, jnp.float32(alpha), jnp.float32(0.0)))
    contrib = w * pt * sp                      # (T, 256); zero on invalid lanes

    # Sublane-aligned partial reduction (pure VPU adds) into the (8,256) scratch;
    # the only cross-lane work is the 256->128 fold below + the wrapper-side sum.
    t_rows = contrib.shape[0]
    acc_ref[...] += contrib.reshape(t_rows // 8, 8, _PAIR_LANES).sum(axis=0)

    @pl.when(i == pl.num_programs(1) - 1)
    def _():
        a = acc_ref[...]
        out_ref[0] = (a[:, :128] + a[:, 128:]) * scale


def focal_loss1(pred, label, alpha=0.25, gamma=2.0, max_tile_rows=_MAX_TILE_ROWS):
    """pred: (N, 2) float logits, label: (N,) int.  Returns scalar f32 loss
    (2 * mean of focal terms), matching FocalLoss1.forward (forward only)."""
    assert pred.ndim == 2 and pred.shape[1] == 2
    assert label.shape == (pred.shape[0],)
    n = pred.shape[0]
    assert n > 0, "FocalLoss1 requires a non-empty batch"

    tile_cap = max(_ROW_ALIGN, (int(max_tile_rows) // _ROW_ALIGN) * _ROW_ALIGN)
    rows = -(-n // _PAIRS_PER_ROW)
    tile_rows = min(_round_up(rows, _ROW_ALIGN), tile_cap)
    num_tiles = _round_up(-(-rows // tile_rows), _NUM_CORES)
    n_inner = num_tiles // _NUM_CORES
    rows_pad = num_tiles * tile_rows
    n_pad = rows_pad * _PAIRS_PER_ROW

    # pred: pad the batch axis only (skipped when already aligned), then a free
    # row-major reshape to the interleaved, fully lane-dense slab.  No transpose.
    p = pred.astype(jnp.float32)
    if n_pad != n:
        p = jnp.pad(p, ((0, n_pad - n), (0, 0)))
    p_slab = p.reshape(rows_pad, _PAIR_LANES)

    # labels -> int8 {1: pos, 0: neg, -1: ignore/pad}, interleaved as [-1, y] so
    # the real label sits on the same (odd) lane as its pair's logit difference.
    lab = jnp.where(label >= 1, jnp.int8(1),
                    jnp.where(label == 0, jnp.int8(0), jnp.int8(-1)))
    lab = jnp.stack([jnp.full_like(lab, -1), lab], axis=-1).reshape(-1)
    if n_pad != n:
        lab = jnp.pad(lab, (0, 2 * (n_pad - n)), constant_values=-1)
    lab_slab = lab.reshape(rows_pad, _PAIR_LANES)

    kernel = functools.partial(
        _focal_loss_kernel,
        alpha=float(alpha),
        gamma=float(gamma),
        scale=2.0 / float(n),          # 2.0 * mean folded into one constant
    )
    partials = pl.pallas_call(
        kernel,
        out_shape=jax.ShapeDtypeStruct((_NUM_CORES, 8, 128), jnp.float32),
        grid_spec=pltpu.PrefetchScalarGridSpec(
            num_scalar_prefetch=0,
            grid=(_NUM_CORES, n_inner),
            in_specs=[
                pl.BlockSpec((tile_rows, _PAIR_LANES),
                             lambda c, i: (c * n_inner + i, 0)),
                pl.BlockSpec((tile_rows, _PAIR_LANES),
                             lambda c, i: (c * n_inner + i, 0)),
            ],
            out_specs=pl.BlockSpec((1, 8, 128), lambda c, i: (c, 0, 0)),
            scratch_shapes=[pltpu.VMEM((8, _PAIR_LANES), jnp.float32)],
        ),
        compiler_params=pltpu.CompilerParams(
            dimension_semantics=("parallel", "arbitrary"),
            vmem_limit_bytes=32 * 1024 * 1024,
            allow_input_fusion=[True, True],
        ),
    )(p_slab, lab_slab)
    # Tiny (2, 8, 128) lane-dense partials -> scalar; scale already applied.
    return jnp.sum(partials)


def _reference(pred, label, alpha=0.25, gamma=2.0):
    # Mirrors the PyTorch forward exactly (exp(.)**gamma form).
    log_prob = jax.nn.log_softmax(pred.astype(jnp.float32), axis=1)
    lpp = log_prob[:, 1]
    lpn = log_prob[:, 0]
    pos = -(1.0 - alpha) * (jnp.exp(lpn) ** gamma) * lpp * (label >= 1).astype(jnp.float32)
    neg = -alpha * (jnp.exp(lpp) ** gamma) * lpn * (label == 0).astype(jnp.float32)
    return 2.0 * jnp.mean(pos + neg)


if __name__ == "__main__":
    key = jax.random.PRNGKey(0)
    k1, k2, k3, k4 = jax.random.split(key, 4)

    # Small, non-128-aligned batch (exercises the batch-axis pad path).
    n1 = 77
    pred1 = jax.random.normal(k1, (n1, 2), dtype=jnp.float32) * 2.0
    label1 = jax.random.randint(k2, (n1,), 0, 2, dtype=jnp.int32)
    out1 = focal_loss1(pred1, label1)
    jax.block_until_ready(out1)
    ref1 = _reference(pred1, label1)
    assert jnp.allclose(out1, ref1, rtol=1e-5, atol=2e-6), (out1, ref1)

    # Larger batch with small tiles: exercises multi-step accumulation, both
    # grid "cores", non-default alpha/gamma and label values {-1, 0, 1, 2}.
    n2 = 9000
    pred2 = jax.random.normal(k3, (n2, 2), dtype=jnp.float32) * 2.0
    label2 = jax.random.randint(k4, (n2,), -1, 3, dtype=jnp.int32)
    out2 = focal_loss1(pred2, label2, alpha=0.4, gamma=3.0, max_tile_rows=32)
    jax.block_until_ready(out2)
    ref2 = _reference(pred2, label2, alpha=0.4, gamma=3.0)
    assert jnp.allclose(out2, ref2, rtol=1e-5, atol=2e-6), (out2, ref2)

    print("KERNEL_OK")
</pallas_src>

<mosaic_0001>
module attributes {stable_mosaic.version = 11 : i64} {
  func.func @_focal_loss_kernel(%arg0: i32, %arg1: i32, %arg2: memref<32x256xf32, #tpu.memory_space<vmem>>, %arg3: memref<32x256xi8, #tpu.memory_space<vmem>>, %arg4: memref<1x8x128xf32, #tpu.memory_space<vmem>>, %arg5: memref<8x256xf32, #tpu.memory_space<vmem>>) attributes {dimension_semantics = [#tpu.dimension_semantics<parallel>, #tpu.dimension_semantics<arbitrary>], iteration_bounds = array<i64: 2, 1>, scalar_prefetch = 0 : i64, scratch_operands = 1 : i64, tpu.core_type = #tpu.core_type<tc>, window_params = [{transform_indices = @transform_0, window_bounds = array<i64: 32, 256>}, {transform_indices = @transform_1, window_bounds = array<i64: 32, 256>}, {transform_indices = @transform_2, window_bounds = array<i64: 1, 8, 128>}]} {
    %c0_i32 = arith.constant 0 : i32
    %0 = arith.cmpi eq, %arg1, %c0_i32 : i32
    %1 = arith.extui %0 : i1 to i32
    %c0_i32_0 = arith.constant 0 : i32
    %2 = arith.cmpi ne, %1, %c0_i32_0 : i32
    scf.if %2 {
      %cst_23 = arith.constant 0.000000e+00 : f32
      %50 = vector.broadcast %cst_23 : f32 to vector<8x256xf32>
      %c0_24 = arith.constant 0 : index
      %c0_25 = arith.constant 0 : index
      %51 = vector.load %arg5[%c0_24, %c0_25] : memref<8x256xf32, #tpu.memory_space<vmem>>, vector<8x256xf32>
      tpu.vector_store %arg5[%c0_24, %c0_25], %50 {strides = array<i32>} : memref<8x256xf32, #tpu.memory_space<vmem>>, vector<8x256xf32>,
    } else {
    }
    %c0 = arith.constant 0 : index
    %c0_1 = arith.constant 0 : index
    %3 = vector.load %arg2[%c0, %c0_1] : memref<32x256xf32, #tpu.memory_space<vmem>>, vector<32x256xf32>
    %c1_i32 = arith.constant 1 : i32
    %4 = tpu.dynamic_rotate %3 by %c1_i32 dim 1 : vector<32x256xf32>, i32 -> vector<32x256xf32>
    %5 = arith.subf %3, %4 : vector<32x256xf32>
    %c0_2 = arith.constant 0 : index
    %c0_3 = arith.constant 0 : index
    %6 = vector.load %arg3[%c0_2, %c0_3] : memref<32x256xi8, #tpu.memory_space<vmem>>, vector<32x256xi8>
    %7 = arith.extsi %6 : vector<32x256xi8> to vector<32x256xi32>
    %c1_i32_4 = arith.constant 1 : i32
    %8 = vector.broadcast %c1_i32_4 : i32 to vector<32x256xi32>
    %9 = arith.cmpi sge, %7, %8 : vector<32x256xi32>
    %c0_i32_5 = arith.constant 0 : i32
    %10 = vector.broadcast %c0_i32_5 : i32 to vector<32x256xi32>
    %11 = arith.cmpi eq, %7, %10 : vector<32x256xi32>
    %c0_i32_6 = arith.constant 0 : i32
    %12 = vector.broadcast %c0_i32_6 : i32 to vector<32x256xi32>
    %13 = arith.cmpi sge, %7, %12 : vector<32x256xi32>
    %cst = arith.constant 0.000000e+00 : f32
    %14 = vector.broadcast %cst : f32 to vector<32x256xf32>
    %15 = arith.subf %14, %5 : vector<32x256xf32>
    %16 = arith.select %9, %15, %5 : vector<32x256xi1>, vector<32x256xf32>
    %cst_7 = arith.constant 0.000000e+00 : f32
    %17 = vector.broadcast %cst_7 : f32 to vector<32x256xf32>
    %18 = arith.select %13, %16, %17 : vector<32x256xi1>, vector<32x256xf32>
    %19 = math.absf %18 : vector<32x256xf32>
    %cst_8 = arith.constant 0.000000e+00 : f32
    %20 = vector.broadcast %cst_8 : f32 to vector<32x256xf32>
    %21 = arith.subf %20, %19 : vector<32x256xf32>
    %22 = math.exp %21 : vector<32x256xf32>
    %cst_9 = arith.constant 1.000000e+00 : f32
    %23 = vector.broadcast %cst_9 : f32 to vector<32x256xf32>
    %24 = arith.addf %23, %22 : vector<32x256xf32>
    %25 = math.log %24 : vector<32x256xf32>
    %cst_10 = arith.constant 0.000000e+00 : f32
    %26 = vector.broadcast %cst_10 : f32 to vector<32x256xf32>
    %27 = arith.maximumf %18, %26 : vector<32x256xf32>
    %28 = arith.addf %27, %25 : vector<32x256xf32>
    %cst_11 = arith.constant 0.000000e+00 : f32
    %29 = vector.broadcast %cst_11 : f32 to vector<32x256xf32>
    %30 = arith.minimumf %18, %29 : vector<32x256xf32>
    %31 = arith.subf %30, %25 : vector<32x256xf32>
    %cst_12 = arith.constant 2.000000e+00 : f32
    %32 = vector.broadcast %cst_12 : f32 to vector<32x256xf32>
    %33 = arith.mulf %32, %31 : vector<32x256xf32>
    %34 = math.exp %33 : vector<32x256xf32>
    %cst_13 = arith.constant 2.500000e-01 : f32
    %cst_14 = arith.constant 0.000000e+00 : f32
    %35 = vector.broadcast %cst_13 : f32 to vector<32x256xf32>
    %36 = vector.broadcast %cst_14 : f32 to vector<32x256xf32>
    %37 = arith.select %11, %35, %36 : vector<32x256xi1>, vector<32x256xf32>
    %cst_15 = arith.constant 7.500000e-01 : f32
    %38 = vector.broadcast %cst_15 : f32 to vector<32x256xf32>
    %39 = arith.select %9, %38, %37 : vector<32x256xi1>, vector<32x256xf32>
    %40 = arith.mulf %39, %34 : vector<32x256xf32>
    %41 = arith.mulf %40, %28 : vector<32x256xf32>
    %c0_16 = arith.constant 0 : index
    %c0_17 = arith.constant 0 : index
    %42 = vector.load %arg5[%c0_16, %c0_17] : memref<8x256xf32, #tpu.memory_space<vmem>>, vector<8x256xf32>
    %43 = vector.shape_cast %41 : vector<32x256xf32> to vector<4x8x256xf32>
    %cst_18 = arith.constant dense<0.000000e+00> : vector<8x256xf32>
    %44 = vector.multi_reduction <add>, %43, %cst_18 [0] : vector<4x8x256xf32> to vector<8x256xf32>
    %45 = arith.addf %42, %44 : vector<8x256xf32>
    %c0_19 = arith.constant 0 : index
    %c0_20 = arith.constant 0 : index
    %46 = vector.load %arg5[%c0_19, %c0_20] : memref<8x256xf32, #tpu.memory_space<vmem>>, vector<8x256xf32>
    tpu.vector_store %arg5[%c0_19, %c0_20], %45 {strides = array<i32>} : memref<8x256xf32, #tpu.memory_space<vmem>>, vector<8x256xf32>,
    %c0_i32_21 = arith.constant 0 : i32
    %47 = arith.cmpi eq, %arg1, %c0_i32_21 : i32
    %48 = arith.extui %47 : i1 to i32
    %c0_i32_22 = arith.constant 0 : i32
    %49 = arith.cmpi ne, %48, %c0_i32_22 : i32
    scf.if %49 {
      %c0_23 = arith.constant 0 : index
      %c0_24 = arith.constant 0 : index
      %50 = vector.load %arg5[%c0_23, %c0_24] : memref<8x256xf32, #tpu.memory_space<vmem>>, vector<8x256xf32>
      %51 = vector.extract_strided_slice %50 {offsets = [0, 0], sizes = [8, 128], strides = [1, 1]} : vector<8x256xf32> to vector<8x128xf32>
      %52 = vector.extract_strided_slice %50 {offsets = [0, 128], sizes = [8, 128], strides = [1, 1]} : vector<8x256xf32> to vector<8x128xf32>
      %53 = arith.addf %51, %52 : vector<8x128xf32>
      %cst_25 = arith.constant 0.0259740259 : f32
      %54 = vector.broadcast %cst_25 : f32 to vector<8x128xf32>
      %55 = arith.mulf %53, %54 : vector<8x128xf32>
      %c0_26 = arith.constant 0 : index
      %c0_27 = arith.constant 0 : index
      %c0_28 = arith.constant 0 : index
      %56 = vector.load %arg4[%c0_26, %c0_27, %c0_28] : memref<1x8x128xf32, #tpu.memory_space<vmem>>, vector<1x8x128xf32>
      %57 = vector.shape_cast %56 : vector<1x8x128xf32> to vector<8x128xf32>
      %58 = vector.shape_cast %55 : vector<8x128xf32> to vector<1x8x128xf32>
      tpu.vector_store %arg4[%c0_26, %c0_27, %c0_28], %58 {strides = array<i32>} : memref<1x8x128xf32, #tpu.memory_space<vmem>>, vector<1x8x128xf32>,
    } else {
    }
    return
  }
  func.func @transform_0(%arg0: i32, %arg1: i32) -> (i32, i32) {
    %c1_i32 = arith.constant 1 : i32
    %0 = arith.muli %arg0, %c1_i32 : i32
    %1 = arith.addi %0, %arg1 : i32
    %c0_i32 = arith.constant 0 : i32
    %c0_i32_0 = arith.constant 0 : i32
    return %1, %c0_i32 : i32, i32
  }
  func.func @transform_1(%arg0: i32, %arg1: i32) -> (i32, i32) {
    %c1_i32 = arith.constant 1 : i32
    %0 = arith.muli %arg0, %c1_i32 : i32
    %1 = arith.addi %0, %arg1 : i32
    %c0_i32 = arith.constant 0 : i32
    %c0_i32_0 = arith.constant 0 : i32
    return %1, %c0_i32 : i32, i32
  }
  func.func @transform_2(%arg0: i32, %arg1: i32) -> (i32, i32, i32) {
    %c0_i32 = arith.constant 0 : i32
    %c0_i32_0 = arith.constant 0 : i32
    %c0_i32_1 = arith.constant 0 : i32
    return %arg0, %c0_i32, %c0_i32_0 : i32, i32, i32
  }
}

</mosaic_0001>

<llo_original>
// kernel: tpu_custom_call.1
$region0: #{tpu_custom_call.1}
  #allocation0 [shape = 'u32[]', space=smem, size = 0x4, offset = 0x4, fixed_abs, tag = 'smem constant byte address 0x4 - core index']
  #allocation1 [shape = 'u32[144,128]{1,0:T(1,128)}', space=vmem, size = 0x12000, scoped, tag = 'internal scratch']
  #allocation2 [shape = 'f32[8,256]{1,0:T(8,128)}', space=vmem, size = 0x2000, scoped, tag = 'scratch operand']
  %s0 = inlined_call_operand.hbm [shape: f32[64,256], index: 0, kind: input, shape index: {}]
  %s1 = inlined_call_operand.hbm [shape: s8[64,256], index: 1, kind: input, shape index: {}]
  %s2 = inlined_call_operand.hbm [shape: f32[2,8,128], index: 2, kind: output, shape index: {}]
  %s3 = sld [smem:[#allocation0]]
  $region57: #{tpu_custom_call.1} parent=0
    _
  %s5 = ssub.s32 1, %s3
  %s6 = scalar_select 0, %s5, %s3
  $region1: #{tpu_custom_call.1} parent=0
    #allocation3 [shape = 'u8[65536]{0}', space=vmem, size = 0x10000, scoped, tag = 'input window, operand 0']
    #allocation4 [shape = 's32[2]{0}', space=sflag, size = 0x8, scoped, tag = 'scoped memory for tpu_custom_call.1']
    #allocation5 [shape = 's32[2]{0}', space=sflag, size = 0x8, scoped, tag = 'scoped memory for tpu_custom_call.1']
    #allocation6 [shape = 'u8[16384]{0}', space=vmem, size = 0x4000, scoped, tag = 'input window, operand 1']
    #allocation7 [shape = 's32[2]{0}', space=sflag, size = 0x8, scoped, tag = 'scoped memory for tpu_custom_call.1']
    #allocation8 [shape = 'u8[8192]{0}', space=vmem, size = 0x2000, scoped, tag = 'output window, operand 0']
    %7 = vsyncpa [#allocation4], 0
    %s8 = scalar_lea.sflag [#allocation4], 1
    %9 = vsyncpa %s8, 0
    %10 = vsyncpa [#allocation7], 0
    %s11 = scalar_lea.sflag [#allocation7], 1
    %12 = vsyncpa %s11, 0
    %13 = vsyncpa [#allocation5], 0
    %s14 = scalar_lea.sflag [#allocation5], 1
    %15 = vsyncpa %s14, 0
    loop: start=0, step=1, limit=4
    $region2: #{tpu_custom_call.1} parent=1 // loop_pre_header
      _
    $region3: #{tpu_custom_call.1} parent=1 // loop_header
      %s17 = sphi 0, %s21
      %p18 = scmp.ge.s32.totalorder %s17, 4
      %s24 = sphi 0, %s36
      %s25 = sphi 0, %s32
      %s26 = sphi 0, %s24
      %s27 = sphi 0, %s25
      %s28 = sphi 0, %s26
      %s29 = sphi 0, %s27
      %s41 = sphi 0, %s43
      %s44 = sphi 0, %s41
      %s45 = sphi 0, %s44
      %s61 = sphi 0, %s45
      %s69 = sphi 0, %s71
      %s72 = sphi 0, %s69
      %s73 = sphi 0, %s72
      %s89 = sphi 0, %s73
      %s95 = sphi 0, %s97
      %s98 = sphi 0, %s95
      %s99 = sphi 0, %s98
      %s115 = sphi 0, %s99
    $region4: #{tpu_custom_call.1} parent=1 // loop_header_branch
      %20 = sbr.rel (%p18) target = $region8
    $region5: #{tpu_custom_call.1} parent=1 // loop_body
      %s22 = ssub.s32 %s17, 1
      %s23 = ssub.s32 %s17, 2
      %s30 = sadd.s32 1, %s25
      %p31 = scmp.ge.s32.totalorder %s30, 1
      %s32 = scalar_select %p31, 0, %s30
      %s33 = sadd.s32 1, %s24
      %s34 = scalar_select %p31, %s33, %s24
      %p35 = scmp.ge.s32.totalorder %s34, 2
      %s36 = scalar_select %p35, 0, %s34
      %s37 = sadd.s32 %s24, %s25
      %s38 = sadd.s32 %s36, %s32
      %s39 = ssub.s32 %s37, %s38
      %p40 = scmp.eq.s32.totalorder %s39, 0
      %s42 = sadd.s32 %s41, 1
      %s43 = scalar_select %p40, %s41, %s42
      %p46 = pneg %p40
      %p47 = scmp.eq.s32.totalorder %s17, 1
      %p48 = por %p46, %p47
      %p49 = scmp.ne.s32.totalorder %s41, %s44
      %p50 = scmp.eq.s32.totalorder %s17, 0
      %p51 = por %p49, %p50
      %p52 = scmp.ne.s32.totalorder %s41, %s44
      %p53 = scmp.eq.s32.totalorder %s22, 1
      %p54 = por %p52, %p53
      %p55 = scmp.ne.s32.totalorder %s44, %s45
      %p56 = scmp.eq.s32.totalorder %s22, 0
      %p57 = por %p55, %p56
      %p58 = scmp.ne.s32.totalorder %s44, %s45
      %p59 = scmp.eq.s32.totalorder %s23, 1
      %p60 = por %p58, %p59
      %p62 = scmp.ne.s32.totalorder %s45, %s61
      %p63 = scmp.eq.s32.totalorder %s23, 0
      %p64 = por %p62, %p63
      %s65 = sadd.s32 %s24, %s25
      %s66 = sadd.s32 %s36, %s32
      %s67 = ssub.s32 %s65, %s66
      %p68 = scmp.eq.s32.totalorder %s67, 0
      %s70 = sadd.s32 %s69, 1
      %s71 = scalar_select %p68, %s69, %s70
      %p74 = pneg %p68
      %p75 = scmp.eq.s32.totalorder %s17, 1
      %p76 = por %p74, %p75
      %p77 = scmp.ne.s32.totalorder %s69, %s72
      %p78 = scmp.eq.s32.totalorder %s17, 0
      %p79 = por %p77, %p78
      %p80 = scmp.ne.s32.totalorder %s69, %s72
      %p81 = scmp.eq.s32.totalorder %s22, 1
      %p82 = por %p80, %p81
      %p83 = scmp.ne.s32.totalorder %s72, %s73
      %p84 = scmp.eq.s32.totalorder %s22, 0
      %p85 = por %p83, %p84
      %p86 = scmp.ne.s32.totalorder %s72, %s73
      %p87 = scmp.eq.s32.totalorder %s23, 1
      %p88 = por %p86, %p87
      %p90 = scmp.ne.s32.totalorder %s73, %s89
      %p91 = scmp.eq.s32.totalorder %s23, 0
      %p92 = por %p90, %p91
      %s93 = ssub.s32 %s24, %s36
      %p94 = scmp.eq.s32.totalorder %s93, 0
      %s96 = sadd.s32 %s95, 1
      %s97 = scalar_select %p94, %s95, %s96
      %p100 = pneg %p94
      %p101 = scmp.eq.s32.totalorder %s17, 1
      %p102 = por %p100, %p101
      %p103 = scmp.ne.s32.totalorder %s95, %s98
      %p104 = scmp.eq.s32.totalorder %s17, 0
      %p105 = por %p103, %p104
      %p106 = scmp.ne.s32.totalorder %s95, %s98
      %p107 = scmp.eq.s32.totalorder %s22, 1
      %p108 = por %p106, %p107
      %p109 = scmp.ne.s32.totalorder %s98, %s99
      %p110 = scmp.eq.s32.totalorder %s22, 0
      %p111 = por %p109, %p110
      %p112 = scmp.ne.s32.totalorder %s98, %s99
      %p113 = scmp.eq.s32.totalorder %s23, 1
      %p114 = por %p112, %p113
      %p116 = scmp.ne.s32.totalorder %s99, %s115
      %p117 = scmp.eq.s32.totalorder %s23, 0
      %p118 = por %p116, %p117
      %p119 = scmp.le.s32.totalorder 1, %s17
      %p120 = scmp.lt.s32.totalorder %s17, 3
      %p121 = pnand %p119, %p120
      %p122 = pneg %p121
      // Predicated region
      $region9: #{tpu_custom_call.1} parent=5 // pred_check
        _
      $region10: #{tpu_custom_call.1} parent=5 // pred_check_branch
        %124 = sbr.rel (%p121) target = $region12
      $region11: #{tpu_custom_call.1} parent=5 // pred_region
        %s125 = ssub.s32 %s17, 1
      $region12: #{tpu_custom_call.1} parent=5 // pred_fallthru
        _
      %p126 = scmp.lt.s32.totalorder %s17, 2
      // Predicated region
      $region13: #{tpu_custom_call.1} parent=5 // pred_check
        %p127 = pneg %p126
      $region14: #{tpu_custom_call.1} parent=5 // pred_check_branch
        %129 = sbr.rel (%p127) target = $region16
      $region15: #{tpu_custom_call.1} parent=5 // pred_region
        // Predicated region
        $region17: #{tpu_custom_call.1} parent=15 // pred_check
          %p130 = pneg %p51
        $region18: #{tpu_custom_call.1} parent=15 // pred_check_branch
          %132 = sbr.rel (%p130) target = $region20
        $region19: #{tpu_custom_call.1} parent=15 // pred_region
          %s133 = sand.u32 %s41, 1
          %s134 = scalar_lea.sflag [#allocation4], %s133
          %s135 = sand.u32 %s41, 1
          %s136 = smul.addr %s135, 64
          %s137 = scalar_lea.vmem [#allocation3], %s136
          %s138 = sadd.s32 %s24, %s25
          %s139 = smul.u32 4, %s138
          %s141 = ssub.s32 1024, 1024
          %142 = vsyncadd %s134, %s141
          %s143 = smul.addr %s139, 2
          %s144 = smul.addr %s143, 128
          %s145 = scalar_lea.hbm %s0, %s144
          %s146 = sshll.u32 %s137, 4
          %s147 = int_to_ptr.vmem [resolvable:$true] %s146
          %152 = dma.hbm_to_vmem [thread:$0]  %s145, 1024, %s147, %s134, 256, 256, 16
        $region20: #{tpu_custom_call.1} parent=15 // pred_fallthru
          _
        // Predicated region
        $region21: #{tpu_custom_call.1} parent=15 // pred_check
          %p153 = pneg %p79
        $region22: #{tpu_custom_call.1} parent=15 // pred_check_branch
          %155 = sbr.rel (%p153) target = $region24
        $region23: #{tpu_custom_call.1} parent=15 // pred_region
          %s156 = sand.u32 %s69, 1
          %s157 = scalar_lea.sflag [#allocation7], %s156
          %s158 = sand.u32 %s69, 1
          %s159 = smul.addr %s158, 16
          %s160 = scalar_lea.vmem [#allocation6], %s159
          %s161 = sadd.s32 %s24, %s25
          %s163 = ssub.s32 256, 256
          %164 = vsyncadd %s157, %s163
          %s165 = smul.addr %s161, 2
          %s166 = smul.addr %s165, 128
          %s167 = scalar_lea.hbm %s1, %s166
          %s169 = sshll.u32 %s160, 4
          %s170 = int_to_ptr.vmem [resolvable:$true] %s169
          %172 = dma.hbm_to_vmem [thread:$0]  %s167, 256, %s170, %s157
        $region24: #{tpu_custom_call.1} parent=15 // pred_fallthru
          _
      $region16: #{tpu_custom_call.1} parent=5 // pred_fallthru
        _
      %p173 = scmp.le.s32.totalorder 1, %s17
      %p174 = scmp.lt.s32.totalorder %s17, 3
      %p175 = pnand %p173, %p174
      %p176 = pneg %p175
      // Predicated region
      $region25: #{tpu_custom_call.1} parent=5 // pred_check
        _
      $region26: #{tpu_custom_call.1} parent=5 // pred_check_branch
        %178 = sbr.rel (%p175) target = $region28
      $region27: #{tpu_custom_call.1} parent=5 // pred_region
        %s179 = ssub.s32 %s17, 1
        %s180 = sand.u32 %s44, 1
        %s181 = scalar_lea.sflag [#allocation4], %s180
        %s182 = sand.u32 %s44, 1
        %s183 = smul.addr %s182, 64
        %s184 = scalar_lea.vmem [#allocation3], %s183
        // Predicated region
        $region29: #{tpu_custom_call.1} parent=27 // pred_check
          %p185 = pneg %p57
        $region30: #{tpu_custom_call.1} parent=27 // pred_check_branch
          %187 = sbr.rel (%p185) target = $region32
        $region31: #{tpu_custom_call.1} parent=27 // pred_region
          %188 = dma.done %s181, 1024
        $region32: #{tpu_custom_call.1} parent=27 // pred_fallthru
          _
        %s189 = sand.u32 %s72, 1
        %s190 = scalar_lea.sflag [#allocation7], %s189
        %s191 = sand.u32 %s72, 1
        %s192 = smul.addr %s191, 16
        %s193 = scalar_lea.vmem [#allocation6], %s192
        // Predicated region
        $region33: #{tpu_custom_call.1} parent=27 // pred_check
          %p194 = pneg %p85
        $region34: #{tpu_custom_call.1} parent=27 // pred_check_branch
          %196 = sbr.rel (%p194) target = $region36
        $region35: #{tpu_custom_call.1} parent=27 // pred_region
          %197 = dma.done %s190, 256
        $region36: #{tpu_custom_call.1} parent=27 // pred_fallthru
          _
        %s198 = sand.u32 %s44, 1
        %s199 = scalar_lea.sflag [#allocation4], %s198
        %s200 = sand.u32 %s44, 1
        %s201 = smul.addr %s200, 64
        %s202 = scalar_lea.vmem [#allocation3], %s201
        %p203 = pneg %p57
        %p204 = pneg %p54
        %s205 = sand.u32 %s72, 1
        %s206 = scalar_lea.sflag [#allocation7], %s205
        %s207 = sand.u32 %s72, 1
        %s208 = smul.addr %s207, 16
        %s209 = scalar_lea.vmem [#allocation6], %s208
        %p210 = pneg %p85
        %p211 = pneg %p82
        %p212 = pneg %p111
        %p213 = pneg %p108
        %s214 = sand.u32 %s98, 1
        %s215 = scalar_lea.sflag [#allocation5], %s214
        %s216 = sand.u32 %s98, 1
        %s217 = smul.addr %s216, 8
        %s218 = scalar_lea.vmem [#allocation8], %s217
        %s219 = sadd.s32 %s26, %s27
        %s220 = smul.u32 4, %s219
        %s221 = sadd.s32 %s26, %s27
        %p222 = scmp.eq.s32.totalorder %s27, 0
        // Predicated region
        $region37: #{tpu_custom_call.1} parent=27 // pred_check
          %p223 = pneg %p222
        $region38: #{tpu_custom_call.1} parent=27 // pred_check_branch
          %225 = sbr.rel (%p223) target = $region40
        $region39: #{tpu_custom_call.1} parent=27 // pred_region
          %226 = vst [vmem:[#allocation2] sm:$0xff] 0.0
          %227 = vst [vmem:[#allocation2 + $0x8] sm:$0xff] 0.0
        $region40: #{tpu_custom_call.1} parent=27 // pred_fallthru
          _
        %v228 = vld [vmem:[%s184] sm:$0xff]
        %v229 = vld [vmem:[%s184 + $0x8] sm:$0xff]
        %v230 = vld [vmem:[%s184 + $0x10] sm:$0xff]
        %v231 = vld [vmem:[%s184 + $0x18] sm:$0xff]
        %v232 = vld [vmem:[%s184 + $0x20] sm:$0xff]
        %v233 = vld [vmem:[%s184 + $0x28] sm:$0xff]
        %v234 = vld [vmem:[%s184 + $0x30] sm:$0xff]
        %v235 = vld [vmem:[%s184 + $0x38] sm:$0xff]
        %236 = vrot.lane.b32.xlu0 %v228, 1
        %v237 = vpop.permute.xlu0 %236
        %238 = vrot.lane.b32.xlu0 %v230, 1
        %v239 = vpop.permute.xlu0 %238
        %240 = vrot.lane.b32.xlu0 %v232, 1
        %v241 = vpop.permute.xlu0 %240
        %242 = vrot.lane.b32.xlu0 %v234, 1
        %v243 = vpop.permute.xlu0 %242
        %244 = vrot.lane.b32.xlu0 %v229, 1
        %v245 = vpop.permute.xlu0 %244
        %246 = vrot.lane.b32.xlu0 %v231, 1
        %v247 = vpop.permute.xlu0 %246
        %248 = vrot.lane.b32.xlu0 %v233, 1
        %v249 = vpop.permute.xlu0 %248
        %250 = vrot.lane.b32.xlu0 %v235, 1
        %v251 = vpop.permute.xlu0 %250
        %v252 = vlaneseq
        %v253 = vand.u32 %v252, 127
        %vm254 = vcmp.lt.s32.totalorder %v253, 1
        %v255 = vsel %vm254, %v237, %v245
        %v256 = vsel %vm254, %v239, %v247
        %v257 = vsel %vm254, %v241, %v249
        %v258 = vsel %vm254, %v243, %v251
        %v259 = vsel %vm254, %v245, %v237
        %v260 = vsel %vm254, %v247, %v239
        %v261 = vsel %vm254, %v249, %v241
        %v262 = vsel %vm254, %v251, %v243
        %v263 = vsub.f32 %v228, %v259
        %v264 = vsub.f32 %v229, %v255
        %v265 = vsub.f32 %v230, %v260
        %v266 = vsub.f32 %v231, %v256
        %v267 = vsub.f32 %v232, %v261
        %v268 = vsub.f32 %v233, %v257
        %v269 = vsub.f32 %v234, %v262
        %v270 = vsub.f32 %v235, %v258
        %v271 = vld [vmem:[%s193] sm:$0xff]
        %v272 = vld [vmem:[%s193 + $0x8] sm:$0xff]
        %v273 = vunpack.c.0.s8 %v271
        %v274 = vunpack.c.0.s8 %v272
        %v275 = vunpack.c.1.s8 %v271
        %v276 = vunpack.c.1.s8 %v272
        %v277 = vunpack.c.2.s8 %v271
        %v278 = vunpack.c.2.s8 %v272
        %v279 = vunpack.c.3.s8 %v271
        %v280 = vunpack.c.3.s8 %v272
        %vm281 = vcmp.ge.s32.totalorder %v273, 1
        %vm282 = vcmp.ge.s32.totalorder %v274, 1
        %vm283 = vcmp.ge.s32.totalorder %v275, 1
        %vm284 = vcmp.ge.s32.totalorder %v276, 1
        %vm285 = vcmp.ge.s32.totalorder %v277, 1
        %vm286 = vcmp.ge.s32.totalorder %v278, 1
        %vm287 = vcmp.ge.s32.totalorder %v279, 1
        %vm288 = vcmp.ge.s32.totalorder %v280, 1
        %vm289 = vcmp.eq.s32.totalorder %v273, 0
        %vm290 = vcmp.eq.s32.totalorder %v274, 0
        %vm291 = vcmp.eq.s32.totalorder %v275, 0
        %vm292 = vcmp.eq.s32.totalorder %v276, 0
        %vm293 = vcmp.eq.s32.totalorder %v277, 0
        %vm294 = vcmp.eq.s32.totalorder %v278, 0
        %vm295 = vcmp.eq.s32.totalorder %v279, 0
        %vm296 = vcmp.eq.s32.totalorder %v280, 0
        %vm297 = vcmp.ge.s32.totalorder %v273, 0
        %vm298 = vcmp.ge.s32.totalorder %v274, 0
        %vm299 = vcmp.ge.s32.totalorder %v275, 0
        %vm300 = vcmp.ge.s32.totalorder %v276, 0
        %vm301 = vcmp.ge.s32.totalorder %v277, 0
        %vm302 = vcmp.ge.s32.totalorder %v278, 0
        %vm303 = vcmp.ge.s32.totalorder %v279, 0
        %vm304 = vcmp.ge.s32.totalorder %v280, 0
        %v305 = vsub.f32 0.0, %v263
        %v306 = vsub.f32 0.0, %v264
        %v307 = vsub.f32 0.0, %v265
        %v308 = vsub.f32 0.0, %v266
        %v309 = vsub.f32 0.0, %v267
        %v310 = vsub.f32 0.0, %v268
        %v311 = vsub.f32 0.0, %v269
        %v312 = vsub.f32 0.0, %v270
        %v313 = vsel %vm281, %v305, %v263
        %v314 = vsel %vm282, %v306, %v264
        %v315 = vsel %vm283, %v307, %v265
        %v316 = vsel %vm284, %v308, %v266
        %v317 = vsel %vm285, %v309, %v267
        %v318 = vsel %vm286, %v310, %v268
        %v319 = vsel %vm287, %v311, %v269
        %v320 = vsel %vm288, %v312, %v270
        %v321 = vsel %vm297, %v313, 0.0
        %v322 = vsel %vm298, %v314, 0.0
        %v323 = vsel %vm299, %v315, 0.0
        %v324 = vsel %vm300, %v316, 0.0
        %v325 = vsel %vm301, %v317, 0.0
        %v326 = vsel %vm302, %v318, 0.0
        %v327 = vsel %vm303, %v319, 0.0
        %v328 = vsel %vm304, %v320, 0.0
        %v329 = vand.u32 2147483647, %v321
        %v330 = vand.u32 2147483647, %v322
        %v331 = vand.u32 2147483647, %v323
        %v332 = vand.u32 2147483647, %v324
        %v333 = vand.u32 2147483647, %v325
        %v334 = vand.u32 2147483647, %v326
        %v335 = vand.u32 2147483647, %v327
        %v336 = vand.u32 2147483647, %v328
        %v337 = vsub.f32 0.0, %v329
        %v338 = vsub.f32 0.0, %v330
        %v339 = vsub.f32 0.0, %v331
        %v340 = vsub.f32 0.0, %v332
        %v341 = vsub.f32 0.0, %v333
        %v342 = vsub.f32 0.0, %v334
        %v343 = vsub.f32 0.0, %v335
        %v344 = vsub.f32 0.0, %v336
        %v345 = vmul.f32 %v337, 1.442695
        %v346 = vpow.pop %v345
        %v347 = vmul.f32 %v338, 1.442695
        %v348 = vpow.pop %v347
        %v349 = vmul.f32 %v339, 1.442695
        %v350 = vpow.pop %v349
        %v351 = vmul.f32 %v340, 1.442695
        %v352 = vpow.pop %v351
        %v353 = vmul.f32 %v341, 1.442695
        %v354 = vpow.pop %v353
        %v355 = vmul.f32 %v342, 1.442695
        %v356 = vpow.pop %v355
        %v357 = vmul.f32 %v343, 1.442695
        %v358 = vpow.pop %v357
        %v359 = vmul.f32 %v344, 1.442695
        %v360 = vpow.pop %v359
        %v361 = vadd.f32 %v346, 1.0
        %v362 = vadd.f32 %v348, 1.0
        %v363 = vadd.f32 %v350, 1.0
        %v364 = vadd.f32 %v352, 1.0
        %v365 = vadd.f32 %v354, 1.0
        %v366 = vadd.f32 %v356, 1.0
        %v367 = vadd.f32 %v358, 1.0
        %v368 = vadd.f32 %v360, 1.0
        %v369 = vlog2.pop %v361
        %v370 = vmul.f32 %v369, 0.6931472
        %v371 = vlog2.pop %v362
        %v372 = vmul.f32 %v371, 0.6931472
        %v373 = vlog2.pop %v363
        %v374 = vmul.f32 %v373, 0.6931472
        %v375 = vlog2.pop %v364
        %v376 = vmul.f32 %v375, 0.6931472
        %v377 = vlog2.pop %v365
        %v378 = vmul.f32 %v377, 0.6931472
        %v379 = vlog2.pop %v366
        %v380 = vmul.f32 %v379, 0.6931472
        %v381 = vlog2.pop %v367
        %v382 = vmul.f32 %v381, 0.6931472
        %v383 = vlog2.pop %v368
        %v384 = vmul.f32 %v383, 0.6931472
        %v385 = vmax.f32 %v321, 0.0
        %v386 = vmax.f32 %v322, 0.0
        %v387 = vmax.f32 %v323, 0.0
        %v388 = vmax.f32 %v324, 0.0
        %v389 = vmax.f32 %v325, 0.0
        %v390 = vmax.f32 %v326, 0.0
        %v391 = vmax.f32 %v327, 0.0
        %v392 = vmax.f32 %v328, 0.0
        %v393 = vadd.f32 %v385, %v370
        %v394 = vadd.f32 %v386, %v372
        %v395 = vadd.f32 %v387, %v374
        %v396 = vadd.f32 %v388, %v376
        %v397 = vadd.f32 %v389, %v378
        %v398 = vadd.f32 %v390, %v380
        %v399 = vadd.f32 %v391, %v382
        %v400 = vadd.f32 %v392, %v384
        %v401 = vmin.f32 %v321, 0.0
        %v402 = vmin.f32 %v322, 0.0
        %v403 = vmin.f32 %v323, 0.0
        %v404 = vmin.f32 %v324, 0.0
        %v405 = vmin.f32 %v325, 0.0
        %v406 = vmin.f32 %v326, 0.0
        %v407 = vmin.f32 %v327, 0.0
        %v408 = vmin.f32 %v328, 0.0
        %v409 = vsub.f32 %v401, %v370
        %v410 = vsub.f32 %v402, %v372
        %v411 = vsub.f32 %v403, %v374
        %v412 = vsub.f32 %v404, %v376
        %v413 = vsub.f32 %v405, %v378
        %v414 = vsub.f32 %v406, %v380
        %v415 = vsub.f32 %v407, %v382
        %v416 = vsub.f32 %v408, %v384
        %v417 = vmul.f32 %v409, 2.0
        %v418 = vmul.f32 %v410, 2.0
        %v419 = vmul.f32 %v411, 2.0
        %v420 = vmul.f32 %v412, 2.0
        %v421 = vmul.f32 %v413, 2.0
        %v422 = vmul.f32 %v414, 2.0
        %v423 = vmul.f32 %v415, 2.0
        %v424 = vmul.f32 %v416, 2.0
        %v425 = vmul.f32 %v417, 1.442695
        %v426 = vpow.pop %v425
        %v427 = vmul.f32 %v418, 1.442695
        %v428 = vpow.pop %v427
        %v429 = vmul.f32 %v419, 1.442695
        %v430 = vpow.pop %v429
        %v431 = vmul.f32 %v420, 1.442695
        %v432 = vpow.pop %v431
        %v433 = vmul.f32 %v421, 1.442695
        %v434 = vpow.pop %v433
        %v435 = vmul.f32 %v422, 1.442695
        %v436 = vpow.pop %v435
        %v437 = vmul.f32 %v423, 1.442695
        %v438 = vpow.pop %v437
        %v439 = vmul.f32 %v424, 1.442695
        %v440 = vpow.pop %v439
        %v441 = vsel %vm289, 0.25, 0.0
        %v442 = vsel %vm290, 0.25, 0.0
        %v443 = vsel %vm291, 0.25, 0.0
        %v444 = vsel %vm292, 0.25, 0.0
        %v445 = vsel %vm293, 0.25, 0.0
        %v446 = vsel %vm294, 0.25, 0.0
        %v447 = vsel %vm295, 0.25, 0.0
        %v448 = vsel %vm296, 0.25, 0.0
        %v449 = vsel %vm281, 0.75, %v441
        %v450 = vsel %vm282, 0.75, %v442
        %v451 = vsel %vm283, 0.75, %v443
        %v452 = vsel %vm284, 0.75, %v444
        %v453 = vsel %vm285, 0.75, %v445
        %v454 = vsel %vm286, 0.75, %v446
        %v455 = vsel %vm287, 0.75, %v447
        %v456 = vsel %vm288, 0.75, %v448
        %v457 = vmul.f32 %v449, %v426
        %v458 = vmul.f32 %v450, %v428
        %v459 = vmul.f32 %v451, %v430
        %v460 = vmul.f32 %v452, %v432
        %v461 = vmul.f32 %v453, %v434
        %v462 = vmul.f32 %v454, %v436
        %v463 = vmul.f32 %v455, %v438
        %v464 = vmul.f32 %v456, %v440
        %v465 = vmul.f32 %v457, %v393
        %v466 = vmul.f32 %v458, %v394
        %v467 = vmul.f32 %v459, %v395
        %v468 = vmul.f32 %v460, %v396
        %v469 = vmul.f32 %v461, %v397
        %v470 = vmul.f32 %v462, %v398
        %v471 = vmul.f32 %v463, %v399
        %v472 = vmul.f32 %v464, %v400
        %v473 = vld [vmem:[#allocation2] sm:$0xff]
        %v474 = vld [vmem:[#allocation2 + $0x8] sm:$0xff]
        %v475 = vadd.f32 %v465, %v467
        %v476 = vadd.f32 %v475, %v469
        %v477 = vadd.f32 %v476, %v471
        %v478 = vadd.f32 %v466, %v468
        %v479 = vadd.f32 %v478, %v470
        %v480 = vadd.f32 %v479, %v472
        %v481 = vadd.f32 %v473, %v477
        %v482 = vadd.f32 %v474, %v480
        %483 = vst [vmem:[#allocation2] sm:$0xff] %v481
        %484 = vst [vmem:[#allocation2 + $0x8] sm:$0xff] %v482
        // Predicated region
        $region41: #{tpu_custom_call.1} parent=27 // pred_check
          %p485 = pneg %p222
        $region42: #{tpu_custom_call.1} parent=27 // pred_check_branch
          %487 = sbr.rel (%p485) target = $region44
        $region43: #{tpu_custom_call.1} parent=27 // pred_region
          %v488 = vld [vmem:[#allocation2] sm:$0xff]
          %v489 = vld [vmem:[#allocation2 + $0x8] sm:$0xff]
          %v490 = vadd.f32 %v488, %v489
          %v491 = vmul.f32 %v490, 0.025974026
          %492 = vst [vmem:[%s218] sm:$0xff] %v491
        $region44: #{tpu_custom_call.1} parent=27 // pred_fallthru
          _
        %s493 = sand.u32 %s98, 1
        %s494 = scalar_lea.sflag [#allocation5], %s493
        %s495 = sand.u32 %s98, 1
        %s496 = smul.addr %s495, 8
        %s497 = scalar_lea.vmem [#allocation8], %s496
        // Predicated region
        $region45: #{tpu_custom_call.1} parent=27 // pred_check
          %p498 = pneg %p108
        $region46: #{tpu_custom_call.1} parent=27 // pred_check_branch
          %500 = sbr.rel (%p498) target = $region48
        $region47: #{tpu_custom_call.1} parent=27 // pred_region
          %s502 = ssub.s32 128, 128
          %503 = vsyncadd %s494, %s502
          %s504 = smul.addr %s26, 128
          %s505 = scalar_lea.hbm %s2, %s504
          %s507 = sshll.u32 %s497, 4
          %s508 = int_to_ptr.vmem [resolvable:$true] %s507
          %510 = dma.vmem_to_hbm [thread:$0]  %s508, 128, %s505, %s494
        $region48: #{tpu_custom_call.1} parent=27 // pred_fallthru
          _
      $region28: #{tpu_custom_call.1} parent=5 // pred_fallthru
        _
      %p511 = scmp.le.s32.totalorder 2, %s17
      // Predicated region
      $region49: #{tpu_custom_call.1} parent=5 // pred_check
        %p512 = pneg %p511
      $region50: #{tpu_custom_call.1} parent=5 // pred_check_branch
        %514 = sbr.rel (%p512) target = $region52
      $region51: #{tpu_custom_call.1} parent=5 // pred_region
        %s515 = ssub.s32 %s17, 2
        // Predicated region
        $region53: #{tpu_custom_call.1} parent=51 // pred_check
          %p516 = pneg %p114
        $region54: #{tpu_custom_call.1} parent=51 // pred_check_branch
          %518 = sbr.rel (%p516) target = $region56
        $region55: #{tpu_custom_call.1} parent=51 // pred_region
          %s519 = sand.u32 %s99, 1
          %s520 = scalar_lea.sflag [#allocation5], %s519
          %s521 = sand.u32 %s99, 1
          %s522 = smul.addr %s521, 8
          %s523 = scalar_lea.vmem [#allocation8], %s522
          %524 = dma.done %s520, 128
        $region56: #{tpu_custom_call.1} parent=51 // pred_fallthru
          _
      $region52: #{tpu_custom_call.1} parent=5 // pred_fallthru
        _
    $region6: #{tpu_custom_call.1} parent=1 // loop_footer
      %s21 = sadd.s32 1, %s17
    $region7: #{tpu_custom_call.1} parent=1 // loop_footer_branch
      %16 = sbr.rel target = $region3
    $region8: #{tpu_custom_call.1} parent=1 // loop_exit
      _
    %525 = vsyncpa [#allocation4], 1
    %s526 = scalar_lea.sflag [#allocation4], 1
    %527 = vsyncpa %s526, 1
    %528 = vsyncpa [#allocation7], 1
    %s529 = scalar_lea.sflag [#allocation7], 1
    %530 = vsyncpa %s529, 1
    %531 = vsyncpa [#allocation5], 1
    %s532 = scalar_lea.sflag [#allocation5], 1
    %533 = vsyncpa %s532, 1

</llo_original>
